<compile_context>
chip_gen: v7x
topology: tpu7x:2x2x1
jax: 0.10.0
libtpu: 0.0.40
codegen_flags: <defaults>
</compile_context>

<pallas_src>
import functools

import jax
import jax.numpy as jnp
from jax.experimental import pallas as pl
from jax.experimental.pallas import tpu as pltpu


def _round_up(x, m):
    return (x + m - 1) // m * m


def _pick_images_per_step(N, Cs, Cout, L, P, min_steps=2, vmem_budget_bytes=24 << 20):
    """Largest divisor of N that keeps >= min_steps grid steps and fits a VMEM budget."""
    per_img = 4 * (Cs * (L + 2 * P)          # xpad scratch
                   + 9 * Cs * L              # patches scratch
                   + 2 * Cs * L              # double-buffered input (upper bound)
                   + 2 * (Cs + Cout) * L)    # double-buffered output (upper bound)
    best = 1
    for nb in range(1, N + 1):
        if N % nb:
            continue
        if N // nb < min(min_steps, N):
            continue
        if nb * per_img > vmem_budget_bytes:
            continue
        best = nb
    return best


def _residual_block_kernel(x_ref, w_ref, b_ref, o_ref, xpad_ref, patches_ref, *,
                           Nb, Cin, Cs, Cout, W, L, P):
    # x_ref: (Nb, Cin, L)     w_ref: (Cout, 9*Cs)     b_ref: (Cout, 1)
    # o_ref: (Nb, Cin+Cout, L)
    # xpad_ref: (Nb, Cs, L + 2P) scratch   patches_ref: (9*Cs, Nb*L) scratch
    f32 = jnp.float32

    # Zero only the halo columns; the interior is fully overwritten every step.
    xpad_ref[:, :, 0:P] = jnp.zeros((Nb, Cs, P), f32)
    xpad_ref[:, :, P + L:P + L + P] = jnp.zeros((Nb, Cs, P), f32)

    # Border-column masks, (1, L), broadcast over channel rows.
    col = jax.lax.broadcasted_iota(jnp.int32, (1, L), 1) % W
    not_first_col = col > 0
    not_last_col = col < (W - 1)

    for n in range(Nb):  # static
        x_n = x_ref[n]                                        # (Cin, L)
        # Lane-aligned interior copy; pad channel rows are written with zeros so every
        # tap slice below is a fully defined (Cs, L) tile (no stale-VMEM / NaN risk).
        xpad_ref[n, 0:Cin, P:P + L] = x_n
        if Cs > Cin:
            xpad_ref[n, Cin:Cs, P:P + L] = jnp.zeros((Cs - Cin, L), f32)
        # Fused residual concat: identity channels go straight to the output.
        o_ref[n, 0:Cin, :] = x_n

        # im2col: 9 shifted taps, each a full sublane-tile-aligned (Cs, L) store.
        t = 0
        for dh in (-1, 0, 1):
            for dw in (-1, 0, 1):
                s = dh * W + dw
                shifted = xpad_ref[n, :, P + s:P + s + L]     # (Cs, L), lane-dense
                if dw == -1:
                    shifted = jnp.where(not_first_col, shifted, 0.0)
                elif dw == 1:
                    shifted = jnp.where(not_last_col, shifted, 0.0)
                patches_ref[t * Cs:(t + 1) * Cs, n * L:(n + 1) * L] = shifted
                t += 1

    # One MXU matmul over all Nb images (K = 9*Cs), then bias + ReLU (f32, lane-dense).
    acc = jnp.dot(w_ref[...], patches_ref[...],
                  preferred_element_type=jnp.float32)         # (Cout, Nb*L)
    acc = jnp.maximum(acc + b_ref[...], 0.0)

    for n in range(Nb):
        o_ref[n, Cin:Cin + Cout, :] = acc[:, n * L:(n + 1) * L].astype(o_ref.dtype)


def residual_block_forward(x_nchw, w_oihw, bias):
    """Reproduces _ResidualBlock.forward: concat([x, relu(conv3x3(x) + b)], dim=1)."""
    N, Cin, H, W = x_nchw.shape
    Cout = w_oihw.shape[0]
    L = H * W
    Cs = _round_up(Cin, 8)            # sublane-aligned im2col channel stride (f32)
    P = _round_up(W + 1, 128)         # lane-aligned flat halo per side

    Nb = _pick_images_per_step(N, Cs, Cout, L, P)
    steps = N // Nb

    # Free contiguous reshape: NCHW -> (N, Cin, H*W); spatial on the lane axis.
    x_flat = x_nchw.reshape(N, Cin, L)
    # OIHW -> (Cout, kh, kw, Cin) -> (Cout, 9, Cs) with zero-padded channel columns
    # matching the sublane-aligned im2col rows, flattened to (Cout, 9*Cs).
    w_taps = jnp.transpose(w_oihw, (0, 2, 3, 1)).reshape(Cout, 9, Cin)
    w_mat = jnp.zeros((Cout, 9, Cs), x_nchw.dtype).at[:, :, :Cin].set(w_taps)
    w_mat = w_mat.reshape(Cout, 9 * Cs)
    b2d = bias.reshape(Cout, 1).astype(jnp.float32)

    kernel = functools.partial(_residual_block_kernel, Nb=Nb, Cin=Cin, Cs=Cs,
                               Cout=Cout, W=W, L=L, P=P)

    out_flat = pl.pallas_call(
        kernel,
        out_shape=jax.ShapeDtypeStruct((N, Cin + Cout, L), x_nchw.dtype),
        grid_spec=pltpu.PrefetchScalarGridSpec(
            num_scalar_prefetch=0,
            grid=(steps,),
            in_specs=[
                pl.BlockSpec((Nb, Cin, L), lambda n: (n, 0, 0)),
                pl.BlockSpec((Cout, 9 * Cs), lambda n: (0, 0)),
                pl.BlockSpec((Cout, 1), lambda n: (0, 0)),
            ],
            out_specs=pl.BlockSpec((Nb, Cin + Cout, L), lambda n: (n, 0, 0)),
            scratch_shapes=[
                pltpu.VMEM((Nb, Cs, L + 2 * P), jnp.float32),
                pltpu.VMEM((9 * Cs, Nb * L), jnp.float32),
            ],
        ),
        compiler_params=pltpu.CompilerParams(
            dimension_semantics=("parallel",)),
    )(x_flat, w_mat, b2d)

    # Free contiguous reshape back to NCHW.
    return out_flat.reshape(N, Cin + Cout, H, W)


if __name__ == "__main__":
    # Small shapes consistent with the module: channels=4, growth_channels=8.
    N, C, H, W = 2, 4, 16, 16
    GC = 8

    key = jax.random.PRNGKey(0)
    kx, kw, kb = jax.random.split(key, 3)

    x = jax.random.normal(kx, (N, C, H, W), dtype=jnp.float32)
    # Deterministic init (roughly matches Conv2d's kaiming-uniform scale).
    fan_in = C * 3 * 3
    bound = 1.0 / (fan_in ** 0.5)
    w = jax.random.uniform(kw, (GC, C, 3, 3), minval=-bound, maxval=bound,
                           dtype=jnp.float32)
    b = jax.random.uniform(kb, (GC,), minval=-bound, maxval=bound,
                           dtype=jnp.float32)

    out = jax.block_until_ready(residual_block_forward(x, w, b))

    # Reference: lax conv, bias, ReLU, channel concat.
    ref_conv = jax.lax.conv_general_dilated(
        x, w, window_strides=(1, 1), padding=((1, 1), (1, 1)),
        dimension_numbers=("NCHW", "OIHW", "NCHW"))
    ref = jnp.concatenate(
        [x, jnp.maximum(ref_conv + b[None, :, None, None], 0.0)], axis=1)
    assert out.shape == (N, C + GC, H, W)
    assert jnp.allclose(out, ref, atol=1e-4, rtol=1e-4)

    print("KERNEL_OK")
</pallas_src>

<mosaic_0001>
module attributes {stable_mosaic.version = 11 : i64} {
  func.func @_residual_block_kernel(%arg0: i32, %arg1: memref<1x4x256xf32, #tpu.memory_space<vmem>>, %arg2: memref<8x72xf32, #tpu.memory_space<vmem>>, %arg3: memref<8x1xf32, #tpu.memory_space<vmem>>, %arg4: memref<1x12x256xf32, #tpu.memory_space<vmem>>, %arg5: memref<1x8x512xf32, #tpu.memory_space<vmem>>, %arg6: memref<72x256xf32, #tpu.memory_space<vmem>>) attributes {dimension_semantics = [#tpu.dimension_semantics<parallel>], iteration_bounds = array<i64: 2>, scalar_prefetch = 0 : i64, scratch_operands = 2 : i64, tpu.core_type = #tpu.core_type<tc>, window_params = [{transform_indices = @transform_0, window_bounds = array<i64: 1, 4, 256>}, {pipeline_mode = #tpu.pipeline_mode<synchronous>, transform_indices = @transform_1, window_bounds = array<i64: 8, 72>}, {pipeline_mode = #tpu.pipeline_mode<synchronous>, transform_indices = @transform_2, window_bounds = array<i64: 8, 1>}, {transform_indices = @transform_3, window_bounds = array<i64: 1, 12, 256>}]} {
    %cst = arith.constant 0.000000e+00 : f32
    %0 = vector.broadcast %cst : f32 to vector<1x8x128xf32>
    %c0 = arith.constant 0 : index
    %c0_0 = arith.constant 0 : index
    %c0_1 = arith.constant 0 : index
    %1 = vector.load %arg5[%c0, %c0_0, %c0_1] : memref<1x8x512xf32, #tpu.memory_space<vmem>>, vector<1x8x128xf32>
    tpu.vector_store %arg5[%c0, %c0_0, %c0_1], %0 {strides = array<i32>} : memref<1x8x512xf32, #tpu.memory_space<vmem>>, vector<1x8x128xf32>,
    %cst_2 = arith.constant 0.000000e+00 : f32
    %2 = vector.broadcast %cst_2 : f32 to vector<1x8x128xf32>
    %c0_3 = arith.constant 0 : index
    %c0_4 = arith.constant 0 : index
    %c384 = arith.constant 384 : index
    %3 = vector.load %arg5[%c0_3, %c0_4, %c384] : memref<1x8x512xf32, #tpu.memory_space<vmem>>, vector<1x8x128xf32>
    tpu.vector_store %arg5[%c0_3, %c0_4, %c384], %2 {strides = array<i32>} : memref<1x8x512xf32, #tpu.memory_space<vmem>>, vector<1x8x128xf32>,
    %4 = tpu.iota {dimensions = array<i32: 1>} : vector<1x256xi32>
    %c16_i32 = arith.constant 16 : i32
    %c0_i32 = arith.constant 0 : i32
    %5 = arith.cmpi eq, %c16_i32, %c0_i32 : i32
    %c1_i32 = arith.constant 1 : i32
    %6 = arith.select %5, %c1_i32, %c16_i32 : i32
    %7 = vector.broadcast %6 : i32 to vector<1x256xi32>
    %8 = arith.remsi %4, %7 : vector<1x256xi32>
    %c0_i32_5 = arith.constant 0 : i32
    %9 = vector.broadcast %c0_i32_5 : i32 to vector<1x256xi32>
    %10 = arith.cmpi ne, %8, %9 : vector<1x256xi32>
    %c0_i32_6 = arith.constant 0 : i32
    %11 = vector.broadcast %c0_i32_6 : i32 to vector<1x256xi32>
    %12 = arith.cmpi slt, %8, %11 : vector<1x256xi32>
    %c0_i32_7 = arith.constant 0 : i32
    %13 = arith.cmpi slt, %6, %c0_i32_7 : i32
    %14 = vector.broadcast %13 : i1 to vector<1x256xi1>
    %15 = vector.broadcast %14 : vector<1x256xi1> to vector<1x256xi1>
    %16 = arith.xori %12, %15 : vector<1x256xi1>
    %17 = arith.andi %16, %10 : vector<1x256xi1>
    %18 = vector.broadcast %6 : i32 to vector<1x256xi32>
    %19 = arith.addi %8, %18 : vector<1x256xi32>
    %20 = arith.select %17, %19, %8 : vector<1x256xi1>, vector<1x256xi32>
    %c0_i32_8 = arith.constant 0 : i32
    %21 = vector.broadcast %c0_i32_8 : i32 to vector<1x256xi32>
    %22 = arith.cmpi sgt, %20, %21 : vector<1x256xi32>
    %c15_i32 = arith.constant 15 : i32
    %23 = vector.broadcast %c15_i32 : i32 to vector<1x256xi32>
    %24 = arith.cmpi slt, %20, %23 : vector<1x256xi32>
    %c0_9 = arith.constant 0 : index
    %c0_10 = arith.constant 0 : index
    %c0_11 = arith.constant 0 : index
    %25 = vector.load %arg1[%c0_9, %c0_10, %c0_11] : memref<1x4x256xf32, #tpu.memory_space<vmem>>, vector<1x4x256xf32>
    %26 = vector.shape_cast %25 : vector<1x4x256xf32> to vector<4x256xf32>
    %c0_12 = arith.constant 0 : index
    %c0_13 = arith.constant 0 : index
    %c128 = arith.constant 128 : index
    %27 = vector.load %arg5[%c0_12, %c0_13, %c128] : memref<1x8x512xf32, #tpu.memory_space<vmem>>, vector<1x4x256xf32>
    %28 = vector.shape_cast %27 : vector<1x4x256xf32> to vector<4x256xf32>
    %29 = vector.shape_cast %26 : vector<4x256xf32> to vector<1x4x256xf32>
    tpu.vector_store %arg5[%c0_12, %c0_13, %c128], %29 {strides = array<i32>} : memref<1x8x512xf32, #tpu.memory_space<vmem>>, vector<1x4x256xf32>,
    %cst_14 = arith.constant 0.000000e+00 : f32
    %30 = vector.broadcast %cst_14 : f32 to vector<4x256xf32>
    %c0_15 = arith.constant 0 : index
    %c4 = arith.constant 4 : index
    %c128_16 = arith.constant 128 : index
    %31 = vector.load %arg5[%c0_15, %c4, %c128_16] : memref<1x8x512xf32, #tpu.memory_space<vmem>>, vector<1x4x256xf32>
    %32 = vector.shape_cast %31 : vector<1x4x256xf32> to vector<4x256xf32>
    %33 = vector.shape_cast %30 : vector<4x256xf32> to vector<1x4x256xf32>
    tpu.vector_store %arg5[%c0_15, %c4, %c128_16], %33 {strides = array<i32>} : memref<1x8x512xf32, #tpu.memory_space<vmem>>, vector<1x4x256xf32>,
    %c0_17 = arith.constant 0 : index
    %c0_18 = arith.constant 0 : index
    %c0_19 = arith.constant 0 : index
    %34 = vector.load %arg4[%c0_17, %c0_18, %c0_19] : memref<1x12x256xf32, #tpu.memory_space<vmem>>, vector<1x4x256xf32>
    %35 = vector.shape_cast %34 : vector<1x4x256xf32> to vector<4x256xf32>
    %36 = vector.shape_cast %26 : vector<4x256xf32> to vector<1x4x256xf32>
    tpu.vector_store %arg4[%c0_17, %c0_18, %c0_19], %36 {strides = array<i32>} : memref<1x12x256xf32, #tpu.memory_space<vmem>>, vector<1x4x256xf32>,
    %c0_20 = arith.constant 0 : index
    %c0_21 = arith.constant 0 : index
    %c111 = arith.constant 111 : index
    %37 = vector.load %arg5[%c0_20, %c0_21, %c111] : memref<1x8x512xf32, #tpu.memory_space<vmem>>, vector<1x8x256xf32>
    %38 = vector.shape_cast %37 : vector<1x8x256xf32> to vector<8x256xf32>
    %cst_22 = arith.constant 0.000000e+00 : f32
    %39 = vector.shape_cast %22 : vector<1x256xi1> to vector<1x256xi1>
    %40 = vector.broadcast %39 : vector<1x256xi1> to vector<8x256xi1>
    %41 = vector.broadcast %cst_22 : f32 to vector<8x256xf32>
    %42 = arith.select %40, %38, %41 : vector<8x256xi1>, vector<8x256xf32>
    %c0_23 = arith.constant 0 : index
    %c0_24 = arith.constant 0 : index
    %43 = vector.load %arg6[%c0_23, %c0_24] : memref<72x256xf32, #tpu.memory_space<vmem>>, vector<8x256xf32>
    tpu.vector_store %arg6[%c0_23, %c0_24], %42 {strides = array<i32>} : memref<72x256xf32, #tpu.memory_space<vmem>>, vector<8x256xf32>,
    %c0_25 = arith.constant 0 : index
    %c0_26 = arith.constant 0 : index
    %c112 = arith.constant 112 : index
    %44 = vector.load %arg5[%c0_25, %c0_26, %c112] : memref<1x8x512xf32, #tpu.memory_space<vmem>>, vector<1x8x256xf32>
    %45 = vector.shape_cast %44 : vector<1x8x256xf32> to vector<8x256xf32>
    %c8 = arith.constant 8 : index
    %c0_27 = arith.constant 0 : index
    %46 = vector.load %arg6[%c8, %c0_27] : memref<72x256xf32, #tpu.memory_space<vmem>>, vector<8x256xf32>
    tpu.vector_store %arg6[%c8, %c0_27], %45 {strides = array<i32>} : memref<72x256xf32, #tpu.memory_space<vmem>>, vector<8x256xf32>,
    %c0_28 = arith.constant 0 : index
    %c0_29 = arith.constant 0 : index
    %c113 = arith.constant 113 : index
    %47 = vector.load %arg5[%c0_28, %c0_29, %c113] : memref<1x8x512xf32, #tpu.memory_space<vmem>>, vector<1x8x256xf32>
    %48 = vector.shape_cast %47 : vector<1x8x256xf32> to vector<8x256xf32>
    %cst_30 = arith.constant 0.000000e+00 : f32
    %49 = vector.shape_cast %24 : vector<1x256xi1> to vector<1x256xi1>
    %50 = vector.broadcast %49 : vector<1x256xi1> to vector<8x256xi1>
    %51 = vector.broadcast %cst_30 : f32 to vector<8x256xf32>
    %52 = arith.select %50, %48, %51 : vector<8x256xi1>, vector<8x256xf32>
    %c16 = arith.constant 16 : index
    %c0_31 = arith.constant 0 : index
    %53 = vector.load %arg6[%c16, %c0_31] : memref<72x256xf32, #tpu.memory_space<vmem>>, vector<8x256xf32>
    tpu.vector_store %arg6[%c16, %c0_31], %52 {strides = array<i32>} : memref<72x256xf32, #tpu.memory_space<vmem>>, vector<8x256xf32>,
    %c0_32 = arith.constant 0 : index
    %c0_33 = arith.constant 0 : index
    %c127 = arith.constant 127 : index
    %54 = vector.load %arg5[%c0_32, %c0_33, %c127] : memref<1x8x512xf32, #tpu.memory_space<vmem>>, vector<1x8x256xf32>
    %55 = vector.shape_cast %54 : vector<1x8x256xf32> to vector<8x256xf32>
    %cst_34 = arith.constant 0.000000e+00 : f32
    %56 = vector.shape_cast %22 : vector<1x256xi1> to vector<1x256xi1>
    %57 = vector.broadcast %56 : vector<1x256xi1> to vector<8x256xi1>
    %58 = vector.broadcast %cst_34 : f32 to vector<8x256xf32>
    %59 = arith.select %57, %55, %58 : vector<8x256xi1>, vector<8x256xf32>
    %c24 = arith.constant 24 : index
    %c0_35 = arith.constant 0 : index
    %60 = vector.load %arg6[%c24, %c0_35] : memref<72x256xf32, #tpu.memory_space<vmem>>, vector<8x256xf32>
    tpu.vector_store %arg6[%c24, %c0_35], %59 {strides = array<i32>} : memref<72x256xf32, #tpu.memory_space<vmem>>, vector<8x256xf32>,
    %c0_36 = arith.constant 0 : index
    %c0_37 = arith.constant 0 : index
    %c128_38 = arith.constant 128 : index
    %61 = vector.load %arg5[%c0_36, %c0_37, %c128_38] : memref<1x8x512xf32, #tpu.memory_space<vmem>>, vector<1x8x256xf32>
    %62 = vector.shape_cast %61 : vector<1x8x256xf32> to vector<8x256xf32>
    %c32 = arith.constant 32 : index
    %c0_39 = arith.constant 0 : index
    %63 = vector.load %arg6[%c32, %c0_39] : memref<72x256xf32, #tpu.memory_space<vmem>>, vector<8x256xf32>
    tpu.vector_store %arg6[%c32, %c0_39], %62 {strides = array<i32>} : memref<72x256xf32, #tpu.memory_space<vmem>>, vector<8x256xf32>,
    %c0_40 = arith.constant 0 : index
    %c0_41 = arith.constant 0 : index
    %c129 = arith.constant 129 : index
    %64 = vector.load %arg5[%c0_40, %c0_41, %c129] : memref<1x8x512xf32, #tpu.memory_space<vmem>>, vector<1x8x256xf32>
    %65 = vector.shape_cast %64 : vector<1x8x256xf32> to vector<8x256xf32>
    %cst_42 = arith.constant 0.000000e+00 : f32
    %66 = vector.shape_cast %24 : vector<1x256xi1> to vector<1x256xi1>
    %67 = vector.broadcast %66 : vector<1x256xi1> to vector<8x256xi1>
    %68 = vector.broadcast %cst_42 : f32 to vector<8x256xf32>
    %69 = arith.select %67, %65, %68 : vector<8x256xi1>, vector<8x256xf32>
    %c40 = arith.constant 40 : index
    %c0_43 = arith.constant 0 : index
    %70 = vector.load %arg6[%c40, %c0_43] : memref<72x256xf32, #tpu.memory_space<vmem>>, vector<8x256xf32>
    tpu.vector_store %arg6[%c40, %c0_43], %69 {strides = array<i32>} : memref<72x256xf32, #tpu.memory_space<vmem>>, vector<8x256xf32>,
    %c0_44 = arith.constant 0 : index
    %c0_45 = arith.constant 0 : index
    %c143 = arith.constant 143 : index
    %71 = vector.load %arg5[%c0_44, %c0_45, %c143] : memref<1x8x512xf32, #tpu.memory_space<vmem>>, vector<1x8x256xf32>
    %72 = vector.shape_cast %71 : vector<1x8x256xf32> to vector<8x256xf32>
    %cst_46 = arith.constant 0.000000e+00 : f32
    %73 = vector.shape_cast %22 : vector<1x256xi1> to vector<1x256xi1>
    %74 = vector.broadcast %73 : vector<1x256xi1> to vector<8x256xi1>
    %75 = vector.broadcast %cst_46 : f32 to vector<8x256xf32>
    %76 = arith.select %74, %72, %75 : vector<8x256xi1>, vector<8x256xf32>
    %c48 = arith.constant 48 : index
    %c0_47 = arith.constant 0 : index
    %77 = vector.load %arg6[%c48, %c0_47] : memref<72x256xf32, #tpu.memory_space<vmem>>, vector<8x256xf32>
    tpu.vector_store %arg6[%c48, %c0_47], %76 {strides = array<i32>} : memref<72x256xf32, #tpu.memory_space<vmem>>, vector<8x256xf32>,
    %c0_48 = arith.constant 0 : index
    %c0_49 = arith.constant 0 : index
    %c144 = arith.constant 144 : index
    %78 = vector.load %arg5[%c0_48, %c0_49, %c144] : memref<1x8x512xf32, #tpu.memory_space<vmem>>, vector<1x8x256xf32>
    %79 = vector.shape_cast %78 : vector<1x8x256xf32> to vector<8x256xf32>
    %c56 = arith.constant 56 : index
    %c0_50 = arith.constant 0 : index
    %80 = vector.load %arg6[%c56, %c0_50] : memref<72x256xf32, #tpu.memory_space<vmem>>, vector<8x256xf32>
    tpu.vector_store %arg6[%c56, %c0_50], %79 {strides = array<i32>} : memref<72x256xf32, #tpu.memory_space<vmem>>, vector<8x256xf32>,
    %c0_51 = arith.constant 0 : index
    %c0_52 = arith.constant 0 : index
    %c145 = arith.constant 145 : index
    %81 = vector.load %arg5[%c0_51, %c0_52, %c145] : memref<1x8x512xf32, #tpu.memory_space<vmem>>, vector<1x8x256xf32>
    %82 = vector.shape_cast %81 : vector<1x8x256xf32> to vector<8x256xf32>
    %cst_53 = arith.constant 0.000000e+00 : f32
    %83 = vector.shape_cast %24 : vector<1x256xi1> to vector<1x256xi1>
    %84 = vector.broadcast %83 : vector<1x256xi1> to vector<8x256xi1>
    %85 = vector.broadcast %cst_53 : f32 to vector<8x256xf32>
    %86 = arith.select %84, %82, %85 : vector<8x256xi1>, vector<8x256xf32>
    %c64 = arith.constant 64 : index
    %c0_54 = arith.constant 0 : index
    %87 = vector.load %arg6[%c64, %c0_54] : memref<72x256xf32, #tpu.memory_space<vmem>>, vector<8x256xf32>
    tpu.vector_store %arg6[%c64, %c0_54], %86 {strides = array<i32>} : memref<72x256xf32, #tpu.memory_space<vmem>>, vector<8x256xf32>,
    %c0_55 = arith.constant 0 : index
    %c0_56 = arith.constant 0 : index
    %88 = vector.load %arg2[%c0_55, %c0_56] : memref<8x72xf32, #tpu.memory_space<vmem>>, vector<8x72xf32>
    %c0_57 = arith.constant 0 : index
    %c0_58 = arith.constant 0 : index
    %89 = vector.load %arg6[%c0_57, %c0_58] : memref<72x256xf32, #tpu.memory_space<vmem>>, vector<72x256xf32>
    %cst_59 = arith.constant dense<0.000000e+00> : vector<8x256xf32>
    %90 = tpu.matmul %88, %89, %cst_59 {dimension_numbers = #tpu.dot_dimension_numbers<[1], [0], [0], [1], [0, 0, 1, 1], [], []>} : vector<8x72xf32>, vector<72x256xf32>, vector<8x256xf32> -> vector<8x256xf32>
    %c0_60 = arith.constant 0 : index
    %c0_61 = arith.constant 0 : index
    %91 = vector.load %arg3[%c0_60, %c0_61] : memref<8x1xf32, #tpu.memory_space<vmem>>, vector<8x1xf32>
    %92 = vector.broadcast %91 : vector<8x1xf32> to vector<8x256xf32>
    %93 = arith.addf %90, %92 : vector<8x256xf32>
    %cst_62 = arith.constant 0.000000e+00 : f32
    %94 = vector.broadcast %cst_62 : f32 to vector<8x256xf32>
    %95 = arith.maximumf %93, %94 : vector<8x256xf32>
    %c0_63 = arith.constant 0 : index
    %c4_64 = arith.constant 4 : index
    %c0_65 = arith.constant 0 : index
    %96 = vector.load %arg4[%c0_63, %c4_64, %c0_65] : memref<1x12x256xf32, #tpu.memory_space<vmem>>, vector<1x8x256xf32>
    %97 = vector.shape_cast %96 : vector<1x8x256xf32> to vector<8x256xf32>
    %98 = vector.shape_cast %95 : vector<8x256xf32> to vector<1x8x256xf32>
    tpu.vector_store %arg4[%c0_63, %c4_64, %c0_65], %98 {strides = array<i32>} : memref<1x12x256xf32, #tpu.memory_space<vmem>>, vector<1x8x256xf32>,
    return
  }
  func.func @transform_0(%arg0: i32) -> (i32, i32, i32) {
    %c0_i32 = arith.constant 0 : i32
    %c0_i32_0 = arith.constant 0 : i32
    %c0_i32_1 = arith.constant 0 : i32
    return %arg0, %c0_i32, %c0_i32_0 : i32, i32, i32
  }
  func.func @transform_1(%arg0: i32) -> (i32, i32) {
    %c0_i32 = arith.constant 0 : i32
    %c0_i32_0 = arith.constant 0 : i32
    %c0_i32_1 = arith.constant 0 : i32
    return %c0_i32, %c0_i32_0 : i32, i32
  }
  func.func @transform_2(%arg0: i32) -> (i32, i32) {
    %c0_i32 = arith.constant 0 : i32
    %c0_i32_0 = arith.constant 0 : i32
    %c0_i32_1 = arith.constant 0 : i32
    return %c0_i32, %c0_i32_0 : i32, i32
  }
  func.func @transform_3(%arg0: i32) -> (i32, i32, i32) {
    %c0_i32 = arith.constant 0 : i32
    %c0_i32_0 = arith.constant 0 : i32
    %c0_i32_1 = arith.constant 0 : i32
    return %arg0, %c0_i32, %c0_i32_0 : i32, i32, i32
  }
}

</mosaic_0001>

<llo_original>
// kernel: tpu_custom_call.1
$region0: #{tpu_custom_call.1}
  #allocation0 [shape = 'u32[]', space=smem, size = 0x4, offset = 0x4, fixed_abs, tag = 'smem constant byte address 0x4 - core index']
  #allocation1 [shape = 'u32[144,128]{1,0:T(1,128)}', space=vmem, size = 0x12000, scoped, tag = 'internal scratch']
  #allocation2 [shape = 'f32[1,8,512]{2,1,0:T(8,128)}', space=vmem, size = 0x4000, scoped, tag = 'scratch operand']
  #allocation3 [shape = 'f32[72,256]{1,0:T(8,128)}', space=vmem, size = 0x12000, scoped, tag = 'scratch operand']
  %s0 = inlined_call_operand.hbm [shape: f32[2,4,256], index: 0, kind: input, shape index: {}]
  %s1 = inlined_call_operand.vmem [shape: f32[8,72], index: 1, kind: input, shape index: {}]
  %s2 = inlined_call_operand.vmem [shape: f32[8,1], index: 2, kind: input, shape index: {}]
  %s3 = inlined_call_operand.vmem [shape: f32[2,12,256], index: 3, kind: output, shape index: {}]
  %s4 = sld [smem:[#allocation0]]
  $region49: #{tpu_custom_call.1} parent=0
    _
  %s6 = ssub.s32 1, %s4
  %s7 = scalar_select 0, %s6, %s4
  $region1: #{tpu_custom_call.1} parent=0
    #allocation4 [shape = 'u8[8192]{0}', space=vmem, size = 0x2000, scoped, tag = 'input window, operand 0']
    #allocation5 [shape = 's32[2]{0}', space=sflag, size = 0x8, scoped, tag = 'scoped memory for tpu_custom_call.1']
    %8 = vsyncpa [#allocation5], 0
    %s9 = scalar_lea.sflag [#allocation5], 1
    %10 = vsyncpa %s9, 0
    loop: start=0, step=1, limit=4
    $region2: #{tpu_custom_call.1} parent=1 // loop_pre_header
      _
    $region3: #{tpu_custom_call.1} parent=1 // loop_header
      %s12 = sphi 0, %s16
      %p13 = scmp.ge.s32.totalorder %s12, 4
      %s22 = sphi 0, %s24
      %s25 = sphi 0, %s22
      %s26 = sphi 0, %s25
      %s42 = sphi 0, %s26
      %s46 = sphi 0, %s46
      %s48 = sphi 0, %s46
      %s49 = sphi 0, %s48
      %s63 = sphi 0, %s49
      %s67 = sphi 0, %s67
      %s69 = sphi 0, %s67
      %s70 = sphi 0, %s69
      %s84 = sphi 0, %s70
      %s90 = sphi 0, %s92
      %s93 = sphi 0, %s90
      %s94 = sphi 0, %s93
      %s110 = sphi 0, %s94
    $region4: #{tpu_custom_call.1} parent=1 // loop_header_branch
      %15 = sbr.rel (%p13) target = $region8
    $region5: #{tpu_custom_call.1} parent=1 // loop_body
      %s17 = ssub.s32 %s12, 1
      %s18 = ssub.s32 %s12, 2
      %s19 = sadd.s32 %s12, 1
      %s20 = ssub.s32 %s12, %s19
      %p21 = scmp.eq.s32.totalorder %s20, 0
      %s23 = sadd.s32 %s22, 1
      %s24 = scalar_select %p21, %s22, %s23
      %p27 = pneg %p21
      %p28 = scmp.eq.s32.totalorder %s12, 1
      %p29 = por %p27, %p28
      %p30 = scmp.ne.s32.totalorder %s22, %s25
      %p31 = scmp.eq.s32.totalorder %s12, 0
      %p32 = por %p30, %p31
      %p33 = scmp.ne.s32.totalorder %s22, %s25
      %p34 = scmp.eq.s32.totalorder %s17, 1
      %p35 = por %p33, %p34
      %p36 = scmp.ne.s32.totalorder %s25, %s26
      %p37 = scmp.eq.s32.totalorder %s17, 0
      %p38 = por %p36, %p37
      %p39 = scmp.ne.s32.totalorder %s25, %s26
      %p40 = scmp.eq.s32.totalorder %s18, 1
      %p41 = por %p39, %p40
      %p43 = scmp.ne.s32.totalorder %s26, %s42
      %p44 = scmp.eq.s32.totalorder %s18, 0
      %p45 = por %p43, %p44
      %s47 = sadd.s32 %s46, 1
      %p50 = scmp.eq.s32.totalorder %s12, 1
      %p51 = scmp.ne.s32.totalorder %s46, %s48
      %p52 = scmp.eq.s32.totalorder %s12, 0
      %p53 = por %p51, %p52
      %p54 = scmp.ne.s32.totalorder %s46, %s48
      %p55 = scmp.eq.s32.totalorder %s17, 1
      %p56 = por %p54, %p55
      %p57 = scmp.ne.s32.totalorder %s48, %s49
      %p58 = scmp.eq.s32.totalorder %s17, 0
      %p59 = por %p57, %p58
      %p60 = scmp.ne.s32.totalorder %s48, %s49
      %p61 = scmp.eq.s32.totalorder %s18, 1
      %p62 = por %p60, %p61
      %p64 = scmp.ne.s32.totalorder %s49, %s63
      %p65 = scmp.eq.s32.totalorder %s18, 0
      %p66 = por %p64, %p65
      %s68 = sadd.s32 %s67, 1
      %p71 = scmp.eq.s32.totalorder %s12, 1
      %p72 = scmp.ne.s32.totalorder %s67, %s69
      %p73 = scmp.eq.s32.totalorder %s12, 0
      %p74 = por %p72, %p73
      %p75 = scmp.ne.s32.totalorder %s67, %s69
      %p76 = scmp.eq.s32.totalorder %s17, 1
      %p77 = por %p75, %p76
      %p78 = scmp.ne.s32.totalorder %s69, %s70
      %p79 = scmp.eq.s32.totalorder %s17, 0
      %p80 = por %p78, %p79
      %p81 = scmp.ne.s32.totalorder %s69, %s70
      %p82 = scmp.eq.s32.totalorder %s18, 1
      %p83 = por %p81, %p82
      %p85 = scmp.ne.s32.totalorder %s70, %s84
      %p86 = scmp.eq.s32.totalorder %s18, 0
      %p87 = por %p85, %p86
      %s88 = ssub.s32 %s12, %s19
      %p89 = scmp.eq.s32.totalorder %s88, 0
      %s91 = sadd.s32 %s90, 1
      %s92 = scalar_select %p89, %s90, %s91
      %p95 = pneg %p89
      %p96 = scmp.eq.s32.totalorder %s12, 1
      %p97 = por %p95, %p96
      %p98 = scmp.ne.s32.totalorder %s90, %s93
      %p99 = scmp.eq.s32.totalorder %s12, 0
      %p100 = por %p98, %p99
      %p101 = scmp.ne.s32.totalorder %s90, %s93
      %p102 = scmp.eq.s32.totalorder %s17, 1
      %p103 = por %p101, %p102
      %p104 = scmp.ne.s32.totalorder %s93, %s94
      %p105 = scmp.eq.s32.totalorder %s17, 0
      %p106 = por %p104, %p105
      %p107 = scmp.ne.s32.totalorder %s93, %s94
      %p108 = scmp.eq.s32.totalorder %s18, 1
      %p109 = por %p107, %p108
      %p111 = scmp.ne.s32.totalorder %s94, %s110
      %p112 = scmp.eq.s32.totalorder %s18, 0
      %p113 = por %p111, %p112
      %p114 = scmp.le.s32.totalorder 1, %s12
      %p115 = scmp.lt.s32.totalorder %s12, 3
      %p116 = pnand %p114, %p115
      %p117 = pneg %p116
      // Predicated region
      $region9: #{tpu_custom_call.1} parent=5 // pred_check
        _
      $region10: #{tpu_custom_call.1} parent=5 // pred_check_branch
        %119 = sbr.rel (%p116) target = $region12
      $region11: #{tpu_custom_call.1} parent=5 // pred_region
        %s120 = ssub.s32 %s12, 1
        // Predicated region
        $region13: #{tpu_custom_call.1} parent=11 // pred_check
          %p121 = pneg %p59
        $region14: #{tpu_custom_call.1} parent=11 // pred_check_branch
          %123 = sbr.rel (%p121) target = $region16
        $region15: #{tpu_custom_call.1} parent=11 // pred_region
          _
        $region16: #{tpu_custom_call.1} parent=11 // pred_fallthru
          _
        // Predicated region
        $region17: #{tpu_custom_call.1} parent=11 // pred_check
          %p124 = pneg %p80
        $region18: #{tpu_custom_call.1} parent=11 // pred_check_branch
          %126 = sbr.rel (%p124) target = $region20
        $region19: #{tpu_custom_call.1} parent=11 // pred_region
          _
        $region20: #{tpu_custom_call.1} parent=11 // pred_fallthru
          _
      $region12: #{tpu_custom_call.1} parent=5 // pred_fallthru
        _
      %p127 = scmp.lt.s32.totalorder %s12, 2
      // Predicated region
      $region21: #{tpu_custom_call.1} parent=5 // pred_check
        %p128 = pneg %p127
      $region22: #{tpu_custom_call.1} parent=5 // pred_check_branch
        %130 = sbr.rel (%p128) target = $region24
      $region23: #{tpu_custom_call.1} parent=5 // pred_region
        // Predicated region
        $region25: #{tpu_custom_call.1} parent=23 // pred_check
          %p131 = pneg %p32
        $region26: #{tpu_custom_call.1} parent=23 // pred_check_branch
          %133 = sbr.rel (%p131) target = $region28
        $region27: #{tpu_custom_call.1} parent=23 // pred_region
          %s134 = sand.u32 %s22, 1
          %s135 = scalar_lea.sflag [#allocation5], %s134
          %s136 = sand.u32 %s22, 1
          %s137 = smul.addr %s136, 8
          %s138 = scalar_lea.vmem [#allocation4], %s137
          %s140 = ssub.s32 128, 128
          %141 = vsyncadd %s135, %s140
          %s142 = smul.addr %s12, 2
          %s143 = smul.addr %s142, 64
          %s144 = scalar_lea.hbm %s0, %s143
          %s146 = sshll.u32 %s138, 4
          %s147 = int_to_ptr.vmem [resolvable:$true] %s146
          %149 = dma.hbm_to_vmem [thread:$0]  %s144, 128, %s147, %s135
        $region28: #{tpu_custom_call.1} parent=23 // pred_fallthru
          _
      $region24: #{tpu_custom_call.1} parent=5 // pred_fallthru
        _
      %p150 = scmp.le.s32.totalorder 1, %s12
      %p151 = scmp.lt.s32.totalorder %s12, 3
      %p152 = pnand %p150, %p151
      %p153 = pneg %p152
      // Predicated region
      $region29: #{tpu_custom_call.1} parent=5 // pred_check
        _
      $region30: #{tpu_custom_call.1} parent=5 // pred_check_branch
        %155 = sbr.rel (%p152) target = $region32
      $region31: #{tpu_custom_call.1} parent=5 // pred_region
        %s156 = ssub.s32 %s12, 1
        %s157 = sand.u32 %s25, 1
        %s158 = scalar_lea.sflag [#allocation5], %s157
        %s159 = sand.u32 %s25, 1
        %s160 = smul.addr %s159, 8
        %s161 = scalar_lea.vmem [#allocation4], %s160
        // Predicated region
        $region33: #{tpu_custom_call.1} parent=31 // pred_check
          %p162 = pneg %p38
        $region34: #{tpu_custom_call.1} parent=31 // pred_check_branch
          %164 = sbr.rel (%p162) target = $region36
        $region35: #{tpu_custom_call.1} parent=31 // pred_region
          %165 = dma.done %s158, 128
        $region36: #{tpu_custom_call.1} parent=31 // pred_fallthru
          _
        %s166 = sand.u32 %s25, 1
        %s167 = scalar_lea.sflag [#allocation5], %s166
        %s168 = sand.u32 %s25, 1
        %s169 = smul.addr %s168, 8
        %s170 = scalar_lea.vmem [#allocation4], %s169
        %p171 = pneg %p38
        %p172 = pneg %p35
        %p173 = pneg %p59
        %p174 = pneg %p56
        %p175 = pneg %p80
        %p176 = pneg %p77
        %p177 = pneg %p106
        %p178 = pneg %p103
        %p179 = scmp.lt.s32.totalorder %s17, 1
        %s180 = scalar_select %p179, %s17, 1
        %s181 = smul.addr %s180, 4
        %s182 = smul.addr %s181, 8
        %s183 = scalar_lea.vmem %s3, %s182
        %p184 = scmp.lt.s32.totalorder %s17, 1
        %s185 = scalar_select %p184, %s17, 1
        %s186 = smul.addr %s185, 4
        %s187 = smul.addr %s186, 8
        %s188 = scalar_lea.vmem %s3, %s187
        %189 = vst [vmem:[#allocation2] sm:$0xff] 0.0
        %190 = vst [vmem:[#allocation2 + $0x18] sm:$0xff] 0.0
        %v191 = vlaneseq
        %v192 = vand.u32 %v191, 127
        %v193 = vadd.s32 %v192, 128
        %vm194 = vcmp.lt.s32.totalorder %v192, 0
        %v195 = vsub.s32 0, %v192
        %v196 = vsel %vm194, %v195, %v192
        %v197 = vshrl.u32 %v196, 4
        %v198 = vand.u32 %v196, 15
        %v199 = vsub.s32 0, %v198
        %v200 = vsel %vm194, %v199, %v198
        %vm201 = vcmp.lt.s32.totalorder %v193, 0
        %v202 = vsub.s32 0, %v193
        %v203 = vsel %vm201, %v202, %v193
        %v204 = vshrl.u32 %v203, 4
        %v205 = vand.u32 %v203, 15
        %v206 = vsub.s32 0, %v205
        %v207 = vsel %vm201, %v206, %v205
        %vm208 = vcmp.ne.s32.totalorder %v200, 0
        %vm209 = vcmp.ne.s32.totalorder %v207, 0
        %vm210 = vcmp.lt.s32.totalorder %v200, 0
        %vm211 = vcmp.lt.s32.totalorder %v207, 0
        %vm212 = vmand %vm210, %vm208
        %vm213 = vmand %vm211, %vm209
        %v214 = vadd.s32 %v200, 16
        %v215 = vadd.s32 %v207, 16
        %v216 = vsel %vm212, %v214, %v200
        %v217 = vsel %vm213, %v215, %v207
        %vm218 = vcmp.gt.s32.totalorder %v216, 0
        %vm219 = vcmp.gt.s32.totalorder %v217, 0
        %vm220 = vcmp.lt.s32.totalorder %v216, 15
        %vm221 = vcmp.lt.s32.totalorder %v217, 15
        %v222 = vld [vmem:[%s161] sm:$0xff]
        %v224 = vcombine.high %v222, %v222
        %226 = vst [vmem:[#allocation2 + $0x8] sm:$0xf] %v222
        %227 = vst [vmem:[#allocation2 + $0x10] sm:$0xf] %v224
        %228 = vst [vmem:[#allocation2 + $0x8] sm:$0xf0] 0.0
        %229 = vst [vmem:[#allocation2 + $0x10] sm:$0xf0] 0.0
        %230 = vst [vmem:[%s188] sm:$0xf] %v222
        %231 = vst [vmem:[%s188 + $0x8] sm:$0xf] %v224
        %v232 = vld [vmem:[#allocation2] sm:$0xff]
        %v233 = vld [vmem:[#allocation2 + $0x8] sm:$0xff]
        %v234 = vld [vmem:[#allocation2 + $0x10] sm:$0xff]
        %v235 = vsel %vm218, 1, 0
        %v236 = vsel %vm219, 1, 0
        %vm237 = vcmp.eq.s32.totalorder %v235, 1
        %vm238 = vcmp.eq.s32.totalorder %v236, 1
        %242 = vrot.lane.b32.xlu0 %v232, 17
        %v243 = vpop.permute.xlu0 %242
        %244 = vrot.lane.b32.xlu0 %v233, 17
        %v245 = vpop.permute.xlu0 %244
        %246 = vrot.lane.b32.xlu0 %v234, 17
        %v247 = vpop.permute.xlu0 %246
        %vm248 = vcmask 138240
        %v249 = vsel %vm248, %v243, %v245
        %v250 = vsel %vm248, %v245, %v247
        %v253 = vsel %vm237, %v249, 0.0
        %v254 = vsel %vm238, %v250, 0.0
        %255 = vst [vmem:[#allocation3] sm:$0xff] %v253
        %256 = vst [vmem:[#allocation3 + $0x8] sm:$0xff] %v254
        %v257 = vld [vmem:[#allocation2] sm:$0xff]
        %v258 = vld [vmem:[#allocation2 + $0x8] sm:$0xff]
        %v259 = vld [vmem:[#allocation2 + $0x10] sm:$0xff]
        %263 = vrot.lane.b32.xlu0 %v257, 16
        %v264 = vpop.permute.xlu0 %263
        %265 = vrot.lane.b32.xlu0 %v258, 16
        %v266 = vpop.permute.xlu0 %265
        %267 = vrot.lane.b32.xlu0 %v259, 16
        %v268 = vpop.permute.xlu0 %267
        %vm269 = vcmask 130048
        %v270 = vsel %vm269, %v264, %v266
        %v271 = vsel %vm269, %v266, %v268
        %274 = vst [vmem:[#allocation3 + $0x10] sm:$0xff] %v270
        %275 = vst [vmem:[#allocation3 + $0x18] sm:$0xff] %v271
        %v276 = vld [vmem:[#allocation2] sm:$0xff]
        %v277 = vld [vmem:[#allocation2 + $0x8] sm:$0xff]
        %v278 = vld [vmem:[#allocation2 + $0x10] sm:$0xff]
        %v279 = vsel %vm220, 1, 0
        %v280 = vsel %vm221, 1, 0
        %vm281 = vcmp.eq.s32.totalorder %v279, 1
        %vm282 = vcmp.eq.s32.totalorder %v280, 1
        %286 = vrot.lane.b32.xlu0 %v276, 15
        %v287 = vpop.permute.xlu0 %286
        %288 = vrot.lane.b32.xlu0 %v277, 15
        %v289 = vpop.permute.xlu0 %288
        %290 = vrot.lane.b32.xlu0 %v278, 15
        %v291 = vpop.permute.xlu0 %290
        %vm292 = vcmask 121856
        %v293 = vsel %vm292, %v287, %v289
        %v294 = vsel %vm292, %v289, %v291
        %v297 = vsel %vm281, %v293, 0.0
        %v298 = vsel %vm282, %v294, 0.0
        %299 = vst [vmem:[#allocation3 + $0x20] sm:$0xff] %v297
        %300 = vst [vmem:[#allocation3 + $0x28] sm:$0xff] %v298
        %v301 = vld [vmem:[#allocation2] sm:$0xff]
        %v302 = vld [vmem:[#allocation2 + $0x8] sm:$0xff]
        %v303 = vld [vmem:[#allocation2 + $0x10] sm:$0xff]
        %307 = vrot.lane.b32.xlu0 %v301, 1
        %v308 = vpop.permute.xlu0 %307
        %309 = vrot.lane.b32.xlu0 %v302, 1
        %v310 = vpop.permute.xlu0 %309
        %311 = vrot.lane.b32.xlu0 %v303, 1
        %v312 = vpop.permute.xlu0 %311
        %vm313 = vcmask 7168
        %v314 = vsel %vm313, %v308, %v310
        %v315 = vsel %vm313, %v310, %v312
        %v318 = vsel %vm237, %v314, 0.0
        %v319 = vsel %vm238, %v315, 0.0
        %320 = vst [vmem:[#allocation3 + $0x30] sm:$0xff] %v318
        %321 = vst [vmem:[#allocation3 + $0x38] sm:$0xff] %v319
        %v322 = vld [vmem:[#allocation2 + $0x8] sm:$0xff]
        %v323 = vld [vmem:[#allocation2 + $0x10] sm:$0xff]
        %324 = vst [vmem:[#allocation3 + $0x40] sm:$0xff] %v322
        %325 = vst [vmem:[#allocation3 + $0x48] sm:$0xff] %v323
        %v326 = vld [vmem:[#allocation2 + $0x8] sm:$0xff]
        %v327 = vld [vmem:[#allocation2 + $0x10] sm:$0xff]
        %v328 = vld [vmem:[#allocation2 + $0x18] sm:$0xff]
        %332 = vrot.lane.b32.xlu0 %v326, 127
        %v333 = vpop.permute.xlu0 %332
        %334 = vrot.lane.b32.xlu0 %v327, 127
        %v335 = vpop.permute.xlu0 %334
        %336 = vrot.lane.b32.xlu0 %v328, 127
        %v337 = vpop.permute.xlu0 %336
        %vm338 = vcmask 1039360
        %v339 = vsel %vm338, %v333, %v335
        %v340 = vsel %vm338, %v335, %v337
        %v343 = vsel %vm281, %v339, 0.0
        %v344 = vsel %vm282, %v340, 0.0
        %345 = vst [vmem:[#allocation3 + $0x50] sm:$0xff] %v343
        %346 = vst [vmem:[#allocation3 + $0x58] sm:$0xff] %v344
        %v347 = vld [vmem:[#allocation2 + $0x8] sm:$0xff]
        %v348 = vld [vmem:[#allocation2 + $0x10] sm:$0xff]
        %v349 = vld [vmem:[#allocation2 + $0x18] sm:$0xff]
        %353 = vrot.lane.b32.xlu0 %v347, 113
        %v354 = vpop.permute.xlu0 %353
        %355 = vrot.lane.b32.xlu0 %v348, 113
        %v356 = vpop.permute.xlu0 %355
        %357 = vrot.lane.b32.xlu0 %v349, 113
        %v358 = vpop.permute.xlu0 %357
        %vm359 = vcmask 924672
        %v360 = vsel %vm359, %v354, %v356
        %v361 = vsel %vm359, %v356, %v358
        %v364 = vsel %vm237, %v360, 0.0
        %v365 = vsel %vm238, %v361, 0.0
        %366 = vst [vmem:[#allocation3 + $0x60] sm:$0xff] %v364
        %367 = vst [vmem:[#allocation3 + $0x68] sm:$0xff] %v365
        %v368 = vld [vmem:[#allocation2 + $0x8] sm:$0xff]
        %v369 = vld [vmem:[#allocation2 + $0x10] sm:$0xff]
        %v370 = vld [vmem:[#allocation2 + $0x18] sm:$0xff]
        %374 = vrot.lane.b32.xlu0 %v368, 112
        %v375 = vpop.permute.xlu0 %374
        %376 = vrot.lane.b32.xlu0 %v369, 112
        %v377 = vpop.permute.xlu0 %376
        %378 = vrot.lane.b32.xlu0 %v370, 112
        %v379 = vpop.permute.xlu0 %378
        %vm380 = vcmask 916480
        %v381 = vsel %vm380, %v375, %v377
        %v382 = vsel %vm380, %v377, %v379
        %385 = vst [vmem:[#allocation3 + $0x70] sm:$0xff] %v381
        %386 = vst [vmem:[#allocation3 + $0x78] sm:$0xff] %v382
        %v387 = vld [vmem:[#allocation2 + $0x8] sm:$0xff]
        %v388 = vld [vmem:[#allocation2 + $0x10] sm:$0xff]
        %v389 = vld [vmem:[#allocation2 + $0x18] sm:$0xff]
        %393 = vrot.lane.b32.xlu0 %v387, 111
        %v394 = vpop.permute.xlu0 %393
        %395 = vrot.lane.b32.xlu0 %v388, 111
        %v396 = vpop.permute.xlu0 %395
        %397 = vrot.lane.b32.xlu0 %v389, 111
        %v398 = vpop.permute.xlu0 %397
        %vm399 = vcmask 908288
        %v400 = vsel %vm399, %v394, %v396
        %v401 = vsel %vm399, %v396, %v398
        %v404 = vsel %vm281, %v400, 0.0
        %v405 = vsel %vm282, %v401, 0.0
        %406 = vst [vmem:[#allocation3 + $0x80] sm:$0xff] %v404
        %407 = vst [vmem:[#allocation3 + $0x88] sm:$0xff] %v405
        %v408 = vld [vmem:[%s1] sm:$0xff]
        %v409 = vld [vmem:[#allocation3] sm:$0xff]
        %v410 = vld [vmem:[#allocation3 + $0x8] sm:$0xff]
        %v411 = vld [vmem:[#allocation3 + $0x10] sm:$0xff]
        %v412 = vld [vmem:[#allocation3 + $0x18] sm:$0xff]
        %v413 = vld [vmem:[#allocation3 + $0x20] sm:$0xff]
        %v414 = vld [vmem:[#allocation3 + $0x28] sm:$0xff]
        %v415 = vld [vmem:[#allocation3 + $0x30] sm:$0xff]
        %v416 = vld [vmem:[#allocation3 + $0x38] sm:$0xff]
        %v417 = vld [vmem:[#allocation3 + $0x40] sm:$0xff]
        %v418 = vld [vmem:[#allocation3 + $0x48] sm:$0xff]
        %v419 = vld [vmem:[#allocation3 + $0x50] sm:$0xff]
        %v420 = vld [vmem:[#allocation3 + $0x58] sm:$0xff]
        %v421 = vld [vmem:[#allocation3 + $0x60] sm:$0xff]
        %v422 = vld [vmem:[#allocation3 + $0x68] sm:$0xff]
        %v423 = vld [vmem:[#allocation3 + $0x70] sm:$0xff]
        %v424 = vld [vmem:[#allocation3 + $0x78] sm:$0xff]
        %v425 = vld [vmem:[#allocation3 + $0x80] sm:$0xff]
        %v426 = vld [vmem:[#allocation3 + $0x88] sm:$0xff]
        %v427 = vld [vmem:[%s2] sm:$0xff]
        %429 = vset.pattern.permute.xlu0 0
        %430 = vperm.xlu0 %429, %v427
        %v431 = vpop.permute.xlu0 %430
        %vm433 = vcmask 588800
        %v435 = vsel %vm433, %v408, 0
        %437 = vmatprep.subr.mxu0 %v410
        %438 = vmatpush1.msra.mxu0 %v409
        %439 = vmatprep.subr.mxu0 %v412
        %440 = vmatpush1.msra.mxu0 %v411
        %441 = vmatprep.subr.mxu0 %v414
        %442 = vmatpush1.msra.mxu0 %v413
        %443 = vmatprep.subr.mxu0 %v416
        %444 = vmatpush1.msra.mxu0 %v415
        %445 = vmatprep.subr.mxu0 %v418
        %446 = vmatpush1.msra.mxu0 %v417
        %447 = vmatprep.subr.mxu0 %v420
        %448 = vmatpush1.msra.mxu0 %v419
        %449 = vmatprep.subr.mxu0 %v422
        %450 = vmatpush1.msra.mxu0 %v421
        %451 = vmatprep.subr.mxu0 %v424
        %452 = vmatpush1.msra.mxu0 %v423
        %453 = vmatprep.subr.mxu0 %v426
        %454 = vmatpush1.msra.mxu0 %v425
        %455 = vmatprep.subr.mxu0 0.0
        %456 = vmatpush1.msra.mxu0 0.0
        %457 = vmatprep.subr.mxu0 0.0
        %458 = vmatpush1.msra.mxu0 0.0
        %459 = vmatprep.subr.mxu0 0.0
        %460 = vmatpush1.msra.mxu0 0.0
        %461 = vmatprep.subr.mxu0 0.0
        %462 = vmatpush1.msra.mxu0 0.0
        %463 = vmatprep.subr.mxu0 0.0
        %464 = vmatpush1.msra.mxu0 0.0
        %465 = vmatprep.subr.mxu0 0.0
        %466 = vmatpush1.msra.mxu0 0.0
        %467 = vmatprep.subr.mxu0 0.0
        %468 = vmatpush1.msra.mxu0 0.0
        %469 = vmatprep.subr.mxu0 0.0
        %470 = vmatpush1.msra.mxu0 0.0
        %471 = vmatprep.subr.mxu0 0.0
        %472 = vmatpush1.msra.mxu0 0.0
        %473 = vmatprep.subr.mxu0 0.0
        %474 = vmatpush1.msra.mxu0 0.0
        %475 = vmatprep.subr.mxu0 0.0
        %476 = vmatpush1.msra.mxu0 0.0
        %477 = vmatprep.subr.mxu0 0.0
        %478 = vmatpush1.msra.mxu0 0.0
        %479 = vmatprep.subr.mxu0 0.0
        %480 = vmatpush1.msra.mxu0 0.0
        %481 = vmatprep.subr.mxu0 0.0
        %482 = vmatpush1.msra.mxu0 0.0
        %483 = vmatprep.subr.mxu0 0.0
        %484 = vmatpush1.msra.mxu0 0.0
        %485 = vmatprep.subr.mxu0 0.0
        %486 = vmatpush1.msra.mxu0 0.0
        %487 = vmatprep.subr.mxu0 0.0
        %488 = vmatpush1.msra.mxu0 0.0
        %489 = vmatprep.subr.mxu0 0.0
        %490 = vmatpush1.msra.mxu0 0.0
        %491 = vmatprep.subr.mxu0 0.0
        %492 = vmatpush1.msra.mxu0 0.0
        %493 = vmatprep.subr.mxu0 0.0
        %494 = vmatpush1.msra.mxu0 0.0
        %495 = vmatprep.subr.mxu0 0.0
        %496 = vmatpush1.msra.mxu0 0.0
        %497 = vmatprep.subr.mxu0 0.0
        %498 = vmatpush1.msra.mxu0 0.0
        %499 = vmatprep.subr.mxu0 0.0
        %500 = vmatpush1.msra.mxu0 0.0
        %501 = vmatprep.mubr.f32.mxu0 0.0
        %502 = vmatmul.mubr.f32.gmra.mrb[0].mxu0 %v435
        %v503 = vpop.f32.mrb[0].mxu0
        %v504 = vadd.f32 %v431, %v503
        %v505 = vpop.f32.mrb[0].mxu0
        %v506 = vadd.f32 %v431, %v505
        %507 = vdwg.mxu0
        %v508 = vmax.f32 %v504, 0.0
        %v509 = vmax.f32 %v506, 0.0
        %v512 = vrot.slane %v508, 4
        %v513 = vrot.slane %v509, 4
        %516 = vst [vmem:[%s188] sm:$0xf0] %v512
        %517 = vst [vmem:[%s188 + $0x8] sm:$0xf0] %v513
        %518 = vst [vmem:[%s188 + $0x10] sm:$0xf] %v512
        %519 = vst [vmem:[%s188 + $0x18] sm:$0xf] %v513
        %p520 = scmp.lt.s32.totalorder %s17, 1
        %s521 = scalar_select %p520, %s17, 1
        %s522 = smul.addr %s521, 4
        %s523 = smul.addr %s522, 8
        %s524 = scalar_lea.vmem %s3, %s523
        // Predicated region
        $region37: #{tpu_custom_call.1} parent=31 // pred_check
          %p525 = pneg %p103
        $region38: #{tpu_custom_call.1} parent=31 // pred_check_branch
          %527 = sbr.rel (%p525) target = $region40
        $region39: #{tpu_custom_call.1} parent=31 // pred_region
          _
        $region40: #{tpu_custom_call.1} parent=31 // pred_fallthru
          _
      $region32: #{tpu_custom_call.1} parent=5 // pred_fallthru
        _
      %p528 = scmp.le.s32.totalorder 2, %s12
      // Predicated region
      $region41: #{tpu_custom_call.1} parent=5 // pred_check
        %p529 = pneg %p528
      $region42: #{tpu_custom_call.1} parent=5 // pred_check_branch
        %531 = sbr.rel (%p529) target = $region44
      $region43: #{tpu_custom_call.1} parent=5 // pred_region
        %s532 = ssub.s32 %s12, 2
        // Predicated region
        $region45: #{tpu_custom_call.1} parent=43 // pred_check
          %p533 = pneg %p109
        $region46: #{tpu_custom_call.1} parent=43 // pred_check_branch
          %535 = sbr.rel (%p533) target = $region48
        $region47: #{tpu_custom_call.1} parent=43 // pred_region
          %p536 = scmp.lt.s32.totalorder %s18, 1
          %s537 = scalar_select %p536, %s18, 1
          %s538 = smul.addr %s537, 4
          %s539 = smul.addr %s538, 8
          %s540 = scalar_lea.vmem %s3, %s539
        $region48: #{tpu_custom_call.1} parent=43 // pred_fallthru
          _
      $region44: #{tpu_custom_call.1} parent=5 // pred_fallthru
        _
    $region6: #{tpu_custom_call.1} parent=1 // loop_footer
      %s16 = sadd.s32 1, %s12
    $region7: #{tpu_custom_call.1} parent=1 // loop_footer_branch
      %11 = sbr.rel target = $region3
    $region8: #{tpu_custom_call.1} parent=1 // loop_exit
      _
    %541 = vsyncpa [#allocation5], 1
    %s542 = scalar_lea.sflag [#allocation5], 1
    %543 = vsyncpa %s542, 1

</llo_original>
